<compile_context>
chip_gen: v6e
topology: v6e:2x2x1
jax: 0.10.0
libtpu: 0.0.40
codegen_flags: <defaults>
</compile_context>

<pallas_src>
import functools

import numpy as np

import jax
import jax.numpy as jnp
from jax.experimental import pallas as pl
from jax.experimental.pallas import tpu as pltpu


_LANE = 128
_SMALL_LIMIT = 256   # max packed lane width for the fused selection-matmul path


# --------------------------------------------------------------------------- #
# Helpers
# --------------------------------------------------------------------------- #
def _vmem_budget():
    """(tile budget, explicit vmem limit) derived from the actual chip generation."""
    try:
        cap = int(pltpu.get_tpu_info().vmem_capacity_bytes)
    except Exception:
        cap = 64 * 1024 * 1024
    budget = max(12 << 20, min(40 << 20, cap // 3))          # v7x ~21MB, v5e/v6e ~40MB
    limit = int(max(budget + (4 << 20),
                    min(cap - (8 << 20), budget + (16 << 20))))
    return budget, limit


def _pick_row_tile(rows, per_row_bytes, fixed_bytes, budget):
    """Largest useful row tile: VMEM-budgeted, multiple of 8, aiming for >=4 grid steps."""
    if rows <= 8:
        return rows
    limit = max(8, (budget - fixed_bytes) // max(per_row_bytes, 1))
    quarter = -(-rows // 4)                  # cdiv(rows, 4): >=2 steps per v7x TensorCore
    quarter = -(-quarter // 8) * 8
    tile = min(1024, limit, quarter)
    return max(8, (tile // 8) * 8)


def _pick_cb(half_w):
    """Column block for the anti-diagonal flip; prefer 128-multiples, must divide half_w."""
    for cb in (256, 128):
        if half_w % cb == 0:
            return cb
    for cb in range(min(half_w, 256), 0, -1):
        if half_w % cb == 0:
            return cb
    return half_w


def _selection_matrix(w, half_w, out_w, take_left, k):
    """(k*w, k*out_w) 0/1 matrix fusing copy + flip for k packed image rows."""
    s = np.zeros((k * w, k * out_w), dtype=np.float32)
    for seg in range(k):
        for c in range(out_w):
            if take_left:
                in_c = c if c < half_w else out_w - 1 - c
            else:
                in_c = (w - 1 - c) if c < half_w else (w - out_w + c)
            s[seg * w + in_c, seg * out_w + c] = 1.0
    return s


def _exact_select_dot(x, sel_bf16, out_dtype):
    """x @ sel for a 0/1 selection matrix; bit-exact for finite floats.

    f32/f16 values are split into bf16-exact hi/md/lo components so every MXU pass is a
    plain bf16 x {0,1} product accumulated in f32, reconstructing the original bits.
    # TODO(synk): non-finite values (inf/NaN) are not bit-preserved through the MXU flip
    # (0 * inf = NaN would pollute the accumulation); finite image data is exact.
    """
    if x.dtype == jnp.bfloat16:
        out = jnp.dot(x, sel_bf16, preferred_element_type=jnp.float32)
        return out.astype(out_dtype)
    xf = x.astype(jnp.float32)
    hi = xf.astype(jnp.bfloat16)
    r0 = xf - hi.astype(jnp.float32)
    md = r0.astype(jnp.bfloat16)
    lo = (r0 - md.astype(jnp.float32)).astype(jnp.bfloat16)
    out = jnp.dot(hi, sel_bf16, preferred_element_type=jnp.float32)
    out = out + jnp.dot(md, sel_bf16, preferred_element_type=jnp.float32)
    out = out + jnp.dot(lo, sel_bf16, preferred_element_type=jnp.float32)
    return out.astype(out_dtype)


# --------------------------------------------------------------------------- #
# Kernels
# --------------------------------------------------------------------------- #
def _select_kernel(x_ref, s_ref, o_ref):
    """Packed path: out = x @ S (copy + flip fused) -> one lane-dense store per tile."""
    o_ref[...] = _exact_select_dot(x_ref[...], s_ref[...], o_ref.dtype)


def _wide_kernel(x_ref, p_ref, o_ref, *, half_w, col0, cb, take_left):
    """Wide path: column-blocked flip with a constant (cb, cb) anti-diagonal.

    x_ref holds either just the needed half (col0 == 0, width == half_w) or the full row
    (unaligned fallback).  Every block is loaded once, stored twice (copy + mirrored flip)
    at static, CB-aligned lane offsets of the resident output tile.
    """
    p = p_ref[...]
    nhb = half_w // cb
    for jj in range(nhb):
        blk = x_ref[:, col0 + jj * cb: col0 + (jj + 1) * cb]
        flipped = _exact_select_dot(blk, p, o_ref.dtype)
        if take_left:
            o_ref[:, jj * cb:(jj + 1) * cb] = blk
            o_ref[:, 2 * half_w - (jj + 1) * cb: 2 * half_w - jj * cb] = flipped
        else:
            o_ref[:, half_w + jj * cb: half_w + (jj + 1) * cb] = blk
            o_ref[:, (nhb - 1 - jj) * cb: (nhb - jj) * cb] = flipped


# --------------------------------------------------------------------------- #
# Wrappers
# --------------------------------------------------------------------------- #
def _mirror_small(x2, rows, w, half_w, out_w, take_left, budget, vmem_limit):
    # Pack k image rows per lane group so narrow images fill the 128-wide lanes; the
    # packed selection matrix is hoisted into the wrapper and passed with a constant
    # index_map, fusing copy + flip into a single MXU pass per tile.
    k = 1
    for cand in (16, 8, 4, 2):
        if rows % cand == 0 and cand * max(w, out_w) <= _SMALL_LIMIT:
            k = cand
            break
    in_w, o_w = k * w, k * out_w
    rows_v = rows // k
    xv = x2.reshape(rows_v, in_w)
    sel = jnp.asarray(_selection_matrix(w, half_w, out_w, take_left, k),
                      dtype=jnp.bfloat16)

    itemsize = x2.dtype.itemsize
    passes = 1 if x2.dtype == jnp.bfloat16 else 3
    per_row = 2 * (in_w + o_w) * itemsize + passes * in_w * 2 + 2 * o_w * 4
    fixed = 2 * int(sel.size) * 2
    row_tile = _pick_row_tile(rows_v, per_row, fixed, budget)
    grid = (pl.cdiv(rows_v, row_tile),)

    cost = pl.CostEstimate(
        flops=int(2 * passes * rows_v * in_w * o_w),
        transcendentals=0,
        bytes_accessed=int(rows_v * (in_w + o_w) * itemsize),
    )
    out = pl.pallas_call(
        _select_kernel,
        out_shape=jax.ShapeDtypeStruct((rows_v, o_w), x2.dtype),
        grid=grid,
        in_specs=[pl.BlockSpec((row_tile, in_w), lambda i: (i, 0)),
                  pl.BlockSpec((in_w, o_w), lambda i: (0, 0))],
        out_specs=pl.BlockSpec((row_tile, o_w), lambda i: (i, 0)),
        compiler_params=pltpu.CompilerParams(
            dimension_semantics=("parallel",),
            vmem_limit_bytes=vmem_limit),
        cost_estimate=cost,
    )(xv, sel)
    return out.reshape(rows, out_w)


def _mirror_wide(x2, rows, w, half_w, out_w, take_left, budget, vmem_limit):
    itemsize = x2.dtype.itemsize
    cb = _pick_cb(half_w)
    perm = jnp.asarray(np.eye(cb, dtype=np.float32)[::-1], dtype=jnp.bfloat16)

    aligned = (w == 2 * half_w) and (half_w % _LANE == 0)
    if aligned:
        # Half-width input blocking: DMA only the half we actually use.
        in_w, col0 = half_w, 0
        in_block_idx = (lambda i: (i, 0)) if take_left else (lambda i: (i, 1))
    else:
        # TODO(synk): odd W / non-128-multiple halves fall back to a full-width read
        # (extra ~W/2 of input HBM traffic) to keep the block math exact.
        in_w, col0 = w, (0 if take_left else w - half_w)
        in_block_idx = lambda i: (i, 0)

    passes = 1 if x2.dtype == jnp.bfloat16 else 3
    per_row = 2 * (in_w + out_w) * itemsize + passes * cb * 2 + 2 * cb * 4
    fixed = 2 * int(perm.size) * 2
    row_tile = _pick_row_tile(rows, per_row, fixed, budget)
    grid = (pl.cdiv(rows, row_tile),)

    cost = pl.CostEstimate(
        flops=int(2 * passes * rows * half_w * cb),
        transcendentals=0,
        bytes_accessed=int(rows * (in_w + out_w) * itemsize),
    )
    kern = functools.partial(_wide_kernel, half_w=half_w, col0=col0, cb=cb,
                             take_left=take_left)
    out = pl.pallas_call(
        kern,
        out_shape=jax.ShapeDtypeStruct((rows, out_w), x2.dtype),
        grid=grid,
        in_specs=[pl.BlockSpec((row_tile, in_w), in_block_idx),
                  pl.BlockSpec((cb, cb), lambda i: (0, 0))],
        out_specs=pl.BlockSpec((row_tile, out_w), lambda i: (i, 0)),
        compiler_params=pltpu.CompilerParams(
            dimension_semantics=("parallel",),
            vmem_limit_bytes=vmem_limit),
        cost_estimate=cost,
    )(x2, perm)
    return out


def _mirror_half(x, take_left):
    """Apply the symmetric split to one NCHW tensor via a Pallas kernel."""
    n, c, h, w = x.shape
    mid = w // 2
    half_w = mid if take_left else w - mid
    out_w = 2 * half_w
    rows = n * c * h
    if half_w == 0 or rows == 0:
        return jnp.zeros((n, c, h, out_w), dtype=x.dtype)

    if not jnp.issubdtype(x.dtype, jnp.floating):
        # TODO(synk): integer dtypes have no exact MXU flip path (v7x MXU is float-only);
        # fall back to plain JAX for them.
        half = x[..., :half_w] if take_left else x[..., w - half_w:]
        flipped = half[..., ::-1]
        return (jnp.concatenate([half, flipped], axis=-1) if take_left
                else jnp.concatenate([flipped, half], axis=-1))

    budget, vmem_limit = _vmem_budget()
    x2 = x.reshape(rows, w)
    if max(w, out_w) <= _SMALL_LIMIT:
        out2 = _mirror_small(x2, rows, w, half_w, out_w, take_left, budget, vmem_limit)
    else:
        out2 = _mirror_wide(x2, rows, w, half_w, out_w, take_left, budget, vmem_limit)
    return out2.reshape(n, c, h, out_w)


def symmetric_image_splitter(x_c, x_v):
    """Forward pass of SymmetricImageSplitter: returns (x1, x2)."""
    x1 = _mirror_half(x_c, take_left=True)
    x2 = _mirror_half(x_v, take_left=False)
    return x1, x2


def _reference(x_c, x_v):
    """Pure-JAX reference mirroring the PyTorch module."""
    w1 = x_c.shape[-1]
    w2 = x_v.shape[-1]
    left = x_c[..., : w1 // 2]
    right = x_v[..., w2 // 2:]
    x1 = jnp.concatenate([left, left[..., ::-1]], axis=-1)
    x2 = jnp.concatenate([right[..., ::-1], right], axis=-1)
    return x1, x2


if __name__ == "__main__":
    key = jax.random.PRNGKey(0)
    k1, k2, k3 = jax.random.split(key, 3)

    # Small deterministic NCHW inputs matching the two-argument forward(x_c, x_v).
    x_c = jax.random.normal(k1, (2, 4, 16, 16), dtype=jnp.float32)
    x_v = jax.random.normal(k2, (2, 3, 32, 32), dtype=jnp.float32)

    x1, x2 = symmetric_image_splitter(x_c, x_v)
    x1, x2 = jax.block_until_ready((x1, x2))

    r1, r2 = _reference(x_c, x_v)
    assert x1.shape == r1.shape and x1.dtype == r1.dtype
    assert x2.shape == r2.shape and x2.dtype == r2.dtype
    assert bool(jnp.array_equal(x1, r1)), "x1 mismatch vs reference"
    assert bool(jnp.array_equal(x2, r2)), "x2 mismatch vs reference"

    # Also exercise the wide, 128-aligned column-blocked path (half-width input DMA).
    x_w = jax.random.normal(k3, (1, 2, 8, 512), dtype=jnp.float32)
    y1, y2 = jax.block_until_ready(symmetric_image_splitter(x_w, x_w))
    s1, s2 = _reference(x_w, x_w)
    assert bool(jnp.array_equal(y1, s1)), "wide x1 mismatch vs reference"
    assert bool(jnp.array_equal(y2, s2)), "wide x2 mismatch vs reference"

    print("KERNEL_OK")
</pallas_src>

<mosaic_0001>
module attributes {stable_mosaic.version = 11 : i64} {
  func.func @_select_kernel(%arg0: i32, %arg1: memref<8x256xf32, #tpu.memory_space<vmem>>, %arg2: memref<256x256xbf16, #tpu.memory_space<vmem>>, %arg3: memref<8x256xf32, #tpu.memory_space<vmem>>) attributes {dimension_semantics = [#tpu.dimension_semantics<parallel>], iteration_bounds = array<i64: 1>, scalar_prefetch = 0 : i64, scratch_operands = 0 : i64, tpu.core_type = #tpu.core_type<tc>, window_params = [{transform_indices = @transform_0, window_bounds = array<i64: 8, 256>}, {pipeline_mode = #tpu.pipeline_mode<synchronous>, transform_indices = @transform_1, window_bounds = array<i64: 256, 256>}, {transform_indices = @transform_2, window_bounds = array<i64: 8, 256>}]} {
    %c0 = arith.constant 0 : index
    %c0_0 = arith.constant 0 : index
    %0 = vector.load %arg1[%c0, %c0_0] : memref<8x256xf32, #tpu.memory_space<vmem>>, vector<8x256xf32>
    %c0_1 = arith.constant 0 : index
    %c0_2 = arith.constant 0 : index
    %1 = vector.load %arg2[%c0_1, %c0_2] : memref<256x256xbf16, #tpu.memory_space<vmem>>, vector<256x256xbf16>
    %2 = arith.truncf %0 : vector<8x256xf32> to vector<8x256xbf16>
    %3 = arith.extf %2 : vector<8x256xbf16> to vector<8x256xf32>
    %4 = arith.subf %0, %3 : vector<8x256xf32>
    %5 = arith.truncf %4 : vector<8x256xf32> to vector<8x256xbf16>
    %6 = arith.extf %5 : vector<8x256xbf16> to vector<8x256xf32>
    %7 = arith.subf %4, %6 : vector<8x256xf32>
    %8 = arith.truncf %7 : vector<8x256xf32> to vector<8x256xbf16>
    %cst = arith.constant dense<0.000000e+00> : vector<8x256xf32>
    %9 = tpu.matmul %2, %1, %cst {dimension_numbers = #tpu.dot_dimension_numbers<[1], [0], [0], [1], [0, 0, 1, 1], [], []>} : vector<8x256xbf16>, vector<256x256xbf16>, vector<8x256xf32> -> vector<8x256xf32>
    %cst_3 = arith.constant dense<0.000000e+00> : vector<8x256xf32>
    %10 = tpu.matmul %5, %1, %cst_3 {dimension_numbers = #tpu.dot_dimension_numbers<[1], [0], [0], [1], [0, 0, 1, 1], [], []>} : vector<8x256xbf16>, vector<256x256xbf16>, vector<8x256xf32> -> vector<8x256xf32>
    %11 = arith.addf %9, %10 : vector<8x256xf32>
    %cst_4 = arith.constant dense<0.000000e+00> : vector<8x256xf32>
    %12 = tpu.matmul %8, %1, %cst_4 {dimension_numbers = #tpu.dot_dimension_numbers<[1], [0], [0], [1], [0, 0, 1, 1], [], []>} : vector<8x256xbf16>, vector<256x256xbf16>, vector<8x256xf32> -> vector<8x256xf32>
    %13 = arith.addf %11, %12 : vector<8x256xf32>
    %c0_5 = arith.constant 0 : index
    %c0_6 = arith.constant 0 : index
    %14 = vector.load %arg3[%c0_5, %c0_6] : memref<8x256xf32, #tpu.memory_space<vmem>>, vector<8x256xf32>
    tpu.vector_store %arg3[%c0_5, %c0_6], %13 {strides = array<i32>} : memref<8x256xf32, #tpu.memory_space<vmem>>, vector<8x256xf32>,
    return
  }
  func.func @transform_0(%arg0: i32) -> (i32, i32) {
    %c0_i32 = arith.constant 0 : i32
    %c0_i32_0 = arith.constant 0 : i32
    return %arg0, %c0_i32 : i32, i32
  }
  func.func @transform_1(%arg0: i32) -> (i32, i32) {
    %c0_i32 = arith.constant 0 : i32
    %c0_i32_0 = arith.constant 0 : i32
    %c0_i32_1 = arith.constant 0 : i32
    return %c0_i32, %c0_i32_0 : i32, i32
  }
  func.func @transform_2(%arg0: i32) -> (i32, i32) {
    %c0_i32 = arith.constant 0 : i32
    %c0_i32_0 = arith.constant 0 : i32
    return %arg0, %c0_i32 : i32, i32
  }
}

</mosaic_0001>

<llo_original>
// kernel: tpu_custom_call.1
$region0: #{tpu_custom_call.1}
  #allocation0 [shape = 'u32[]', space=smem, size = 0x4, offset = 0x4, fixed_abs, tag = 'smem constant byte address 0x4 - core index']
  #allocation1 [shape = 'u32[144,128]{1,0:T(1,128)}', space=vmem, size = 0x12000, scoped, tag = 'internal scratch']
  %s0 = inlined_call_operand.hbm [shape: f32[8,256], index: 0, kind: input, shape index: {}]
  %s1 = inlined_call_operand.hbm [shape: bf16[256,256], index: 1, kind: input, shape index: {}]
  %s2 = inlined_call_operand.hbm [shape: f32[8,256], index: 2, kind: output, shape index: {}]
  %s3 = sld [smem:[#allocation0]]
  $region26: #{tpu_custom_call.1} parent=0
    _
  %s5 = ssub.s32 1, %s3
  %s6 = scalar_select 0, %s5, %s3
  $region1: #{tpu_custom_call.1} parent=0
    #allocation2 [shape = 'u8[8192]{0}', space=vmem, size = 0x2000, scoped, tag = 'input window, operand 0, single buffered']
    #allocation3 [shape = 's32[1]{0}', space=sflag, size = 0x4, scoped, tag = 'scoped memory for tpu_custom_call.1']
    #allocation4 [shape = 's32[1]{0}', space=sflag, size = 0x4, scoped, tag = 'scoped memory for tpu_custom_call.1']
    #allocation5 [shape = 'u8[131072]{0}', space=vmem, size = 0x20000, scoped, tag = 'input window, operand 1, single buffered']
    #allocation6 [shape = 's32[1]{0}', space=sflag, size = 0x4, scoped, tag = 'scoped memory for tpu_custom_call.1']
    #allocation7 [shape = 'u8[8192]{0}', space=vmem, size = 0x2000, scoped, tag = 'output window, operand 0, single buffered']
    %7 = vsyncpa [#allocation3], 0
    %8 = vsyncpa [#allocation6], 0
    %9 = vsyncpa [#allocation4], 0
    // Predicated region
    $region2: #{tpu_custom_call.1} parent=1 // pred_check
      _
    $region3: #{tpu_custom_call.1} parent=1 // pred_check_branch
      %11 = sbr.rel (0) target = $region5
    $region4: #{tpu_custom_call.1} parent=1 // pred_region
      %s13 = ssub.s32 256, 256
      %14 = vsyncadd [#allocation3], %s13
      %s16 = sshll.u32 [#allocation2], 4
      %s17 = int_to_ptr.vmem [resolvable:$true] %s16
      %19 = dma.hbm_to_vmem [thread:$0]  %s0, 256, %s17, [#allocation3]
    $region5: #{tpu_custom_call.1} parent=1 // pred_fallthru
      _
    // Predicated region
    $region6: #{tpu_custom_call.1} parent=1 // pred_check
      _
    $region7: #{tpu_custom_call.1} parent=1 // pred_check_branch
      %21 = sbr.rel (0) target = $region9
    $region8: #{tpu_custom_call.1} parent=1 // pred_region
      %s23 = ssub.s32 4096, 4096
      %24 = vsyncadd [#allocation6], %s23
      %s25 = sshll.u32 [#allocation5], 4
      %s26 = int_to_ptr.vmem [resolvable:$true] %s25
      %31 = dma.hbm_to_vmem [thread:$0]  %s1, 4096, %s26, [#allocation6], 128, 128, 8
    $region9: #{tpu_custom_call.1} parent=1 // pred_fallthru
      _
    // Predicated region
    $region10: #{tpu_custom_call.1} parent=1 // pred_check
      _
    $region11: #{tpu_custom_call.1} parent=1 // pred_check_branch
      %33 = sbr.rel (0) target = $region13
    $region12: #{tpu_custom_call.1} parent=1 // pred_region
      %34 = dma.done [#allocation3], 256
    $region13: #{tpu_custom_call.1} parent=1 // pred_fallthru
      _
    // Predicated region
    $region14: #{tpu_custom_call.1} parent=1 // pred_check
      _
    $region15: #{tpu_custom_call.1} parent=1 // pred_check_branch
      %36 = sbr.rel (0) target = $region17
    $region16: #{tpu_custom_call.1} parent=1 // pred_region
      %37 = dma.done [#allocation6], 4096
    $region17: #{tpu_custom_call.1} parent=1 // pred_fallthru
      _
    %v38 = vld [vmem:[#allocation2] sm:$0xff]
    %v39 = vld [vmem:[#allocation2 + $0x8] sm:$0xff]
    %v40 = vld [vmem:[#allocation5] sm:$0xff]
    %v41 = vld [vmem:[#allocation5 + $0x8] sm:$0xff]
    %v42 = vld [vmem:[#allocation5 + $0x10] sm:$0xff]
    %v43 = vld [vmem:[#allocation5 + $0x18] sm:$0xff]
    %v44 = vld [vmem:[#allocation5 + $0x20] sm:$0xff]
    %v45 = vld [vmem:[#allocation5 + $0x28] sm:$0xff]
    %v46 = vld [vmem:[#allocation5 + $0x30] sm:$0xff]
    %v47 = vld [vmem:[#allocation5 + $0x38] sm:$0xff]
    %v48 = vld [vmem:[#allocation5 + $0x40] sm:$0xff]
    %v49 = vld [vmem:[#allocation5 + $0x48] sm:$0xff]
    %v50 = vld [vmem:[#allocation5 + $0x50] sm:$0xff]
    %v51 = vld [vmem:[#allocation5 + $0x58] sm:$0xff]
    %v52 = vld [vmem:[#allocation5 + $0x60] sm:$0xff]
    %v53 = vld [vmem:[#allocation5 + $0x68] sm:$0xff]
    %v54 = vld [vmem:[#allocation5 + $0x70] sm:$0xff]
    %v55 = vld [vmem:[#allocation5 + $0x78] sm:$0xff]
    %v56 = vld [vmem:[#allocation5 + $0x80] sm:$0xff]
    %v57 = vld [vmem:[#allocation5 + $0x88] sm:$0xff]
    %v58 = vld [vmem:[#allocation5 + $0x90] sm:$0xff]
    %v59 = vld [vmem:[#allocation5 + $0x98] sm:$0xff]
    %v60 = vld [vmem:[#allocation5 + $0xa0] sm:$0xff]
    %v61 = vld [vmem:[#allocation5 + $0xa8] sm:$0xff]
    %v62 = vld [vmem:[#allocation5 + $0xb0] sm:$0xff]
    %v63 = vld [vmem:[#allocation5 + $0xb8] sm:$0xff]
    %v64 = vld [vmem:[#allocation5 + $0xc0] sm:$0xff]
    %v65 = vld [vmem:[#allocation5 + $0xc8] sm:$0xff]
    %v66 = vld [vmem:[#allocation5 + $0xd0] sm:$0xff]
    %v67 = vld [vmem:[#allocation5 + $0xd8] sm:$0xff]
    %v68 = vld [vmem:[#allocation5 + $0xe0] sm:$0xff]
    %v69 = vld [vmem:[#allocation5 + $0xe8] sm:$0xff]
    %v70 = vld [vmem:[#allocation5 + $0xf0] sm:$0xff]
    %v71 = vld [vmem:[#allocation5 + $0xf8] sm:$0xff]
    %v72 = vpack.c.bf16 %v38, %v38
    %v73 = vpack.c.bf16 %v39, %v39
    %v74 = vunpack.c.l.bf16 %v72
    %v75 = vunpack.c.l.bf16 %v73
    %v76 = vsub.f32 %v38, %v74
    %v77 = vsub.f32 %v39, %v75
    %v78 = vpack.c.bf16 %v76, %v76
    %v79 = vpack.c.bf16 %v77, %v77
    %v80 = vunpack.c.l.bf16 %v78
    %v81 = vunpack.c.l.bf16 %v79
    %v82 = vsub.f32 %v76, %v80
    %v83 = vsub.f32 %v77, %v81
    %v84 = vpack.c.bf16 %v82, %v82
    %v85 = vpack.c.bf16 %v83, %v83
    %v118 = vunpack.c.l.b16 %v40
    %v119 = vunpack.c.h.b16 %v40
    %v120 = vunpack.c.l.b16 %v41
    %v121 = vunpack.c.h.b16 %v41
    %v122 = vunpack.c.l.b16 %v42
    %v123 = vunpack.c.h.b16 %v42
    %v124 = vunpack.c.l.b16 %v43
    %v125 = vunpack.c.h.b16 %v43
    %v126 = vunpack.c.l.b16 %v44
    %v127 = vunpack.c.h.b16 %v44
    %v128 = vunpack.c.l.b16 %v45
    %v129 = vunpack.c.h.b16 %v45
    %v130 = vunpack.c.l.b16 %v46
    %v131 = vunpack.c.h.b16 %v46
    %v132 = vunpack.c.l.b16 %v47
    %v133 = vunpack.c.h.b16 %v47
    %v134 = vunpack.c.l.b16 %v48
    %v135 = vunpack.c.h.b16 %v48
    %v136 = vunpack.c.l.b16 %v49
    %v137 = vunpack.c.h.b16 %v49
    %v138 = vunpack.c.l.b16 %v50
    %v139 = vunpack.c.h.b16 %v50
    %v140 = vunpack.c.l.b16 %v51
    %v141 = vunpack.c.h.b16 %v51
    %v142 = vunpack.c.l.b16 %v52
    %v143 = vunpack.c.h.b16 %v52
    %v144 = vunpack.c.l.b16 %v53
    %v145 = vunpack.c.h.b16 %v53
    %v146 = vunpack.c.l.b16 %v54
    %v147 = vunpack.c.h.b16 %v54
    %v148 = vunpack.c.l.b16 %v55
    %v149 = vunpack.c.h.b16 %v55
    %v150 = vunpack.c.l.b16 %v56
    %v151 = vunpack.c.h.b16 %v56
    %v152 = vunpack.c.l.b16 %v57
    %v153 = vunpack.c.h.b16 %v57
    %v154 = vunpack.c.l.b16 %v58
    %v155 = vunpack.c.h.b16 %v58
    %v156 = vunpack.c.l.b16 %v59
    %v157 = vunpack.c.h.b16 %v59
    %v158 = vunpack.c.l.b16 %v60
    %v159 = vunpack.c.h.b16 %v60
    %v160 = vunpack.c.l.b16 %v61
    %v161 = vunpack.c.h.b16 %v61
    %v162 = vunpack.c.l.b16 %v62
    %v163 = vunpack.c.h.b16 %v62
    %v164 = vunpack.c.l.b16 %v63
    %v165 = vunpack.c.h.b16 %v63
    %v166 = vunpack.c.l.b16 %v64
    %v167 = vunpack.c.h.b16 %v64
    %v168 = vunpack.c.l.b16 %v65
    %v169 = vunpack.c.h.b16 %v65
    %v170 = vunpack.c.l.b16 %v66
    %v171 = vunpack.c.h.b16 %v66
    %v172 = vunpack.c.l.b16 %v67
    %v173 = vunpack.c.h.b16 %v67
    %v174 = vunpack.c.l.b16 %v68
    %v175 = vunpack.c.h.b16 %v68
    %v176 = vunpack.c.l.b16 %v69
    %v177 = vunpack.c.h.b16 %v69
    %v178 = vunpack.c.l.b16 %v70
    %v179 = vunpack.c.h.b16 %v70
    %v180 = vunpack.c.l.b16 %v71
    %v181 = vunpack.c.h.b16 %v71
    %v182 = vpack.c.b16 %v120, %v118
    %v183 = vpack.c.b16 %v121, %v119
    %v184 = vpack.c.b16 %v124, %v122
    %v185 = vpack.c.b16 %v125, %v123
    %v186 = vpack.c.b16 %v128, %v126
    %v187 = vpack.c.b16 %v129, %v127
    %v188 = vpack.c.b16 %v132, %v130
    %v189 = vpack.c.b16 %v133, %v131
    %v190 = vpack.c.b16 %v136, %v134
    %v191 = vpack.c.b16 %v137, %v135
    %v192 = vpack.c.b16 %v140, %v138
    %v193 = vpack.c.b16 %v141, %v139
    %v194 = vpack.c.b16 %v144, %v142
    %v195 = vpack.c.b16 %v145, %v143
    %v196 = vpack.c.b16 %v148, %v146
    %v197 = vpack.c.b16 %v149, %v147
    %v198 = vpack.c.b16 %v152, %v150
    %v199 = vpack.c.b16 %v153, %v151
    %v200 = vpack.c.b16 %v156, %v154
    %v201 = vpack.c.b16 %v157, %v155
    %v202 = vpack.c.b16 %v160, %v158
    %v203 = vpack.c.b16 %v161, %v159
    %v204 = vpack.c.b16 %v164, %v162
    %v205 = vpack.c.b16 %v165, %v163
    %v206 = vpack.c.b16 %v168, %v166
    %v207 = vpack.c.b16 %v169, %v167
    %v208 = vpack.c.b16 %v172, %v170
    %v209 = vpack.c.b16 %v173, %v171
    %v210 = vpack.c.b16 %v176, %v174
    %v211 = vpack.c.b16 %v177, %v175
    %v212 = vpack.c.b16 %v180, %v178
    %v213 = vpack.c.b16 %v181, %v179
    %246 = vmatprep.subr.bf16.mxu0 %v197
    %247 = vmatpush1.bf16.msra.mxu0 %v196
    %248 = vmatprep.subr.bf16.mxu0 %v195
    %249 = vmatpush1.bf16.msra.mxu0 %v194
    %250 = vmatprep.subr.bf16.mxu0 %v193
    %251 = vmatpush1.bf16.msra.mxu0 %v192
    %252 = vmatprep.subr.bf16.mxu0 %v191
    %253 = vmatpush1.bf16.msra.mxu0 %v190
    %254 = vmatprep.subr.bf16.mxu0 %v189
    %255 = vmatpush1.bf16.msra.mxu0 %v188
    %256 = vmatprep.subr.bf16.mxu0 %v187
    %257 = vmatpush1.bf16.msra.mxu0 %v186
    %258 = vmatprep.subr.bf16.mxu0 %v185
    %259 = vmatpush1.bf16.msra.mxu0 %v184
    %260 = vmatprep.subr.bf16.mxu0 %v183
    %261 = vmatpush1.bf16.msra.mxu0 %v182
    %262 = vmatprep.subr.bf16.mxu0 %v213
    %263 = vmatpush2.bf16.msra.mxu0 %v212
    %264 = vmatprep.subr.bf16.mxu0 %v211
    %265 = vmatpush2.bf16.msra.mxu0 %v210
    %266 = vmatprep.subr.bf16.mxu0 %v209
    %267 = vmatpush2.bf16.msra.mxu0 %v208
    %268 = vmatprep.subr.bf16.mxu0 %v207
    %269 = vmatpush2.bf16.msra.mxu0 %v206
    %270 = vmatprep.subr.bf16.mxu0 %v205
    %271 = vmatpush2.bf16.msra.mxu0 %v204
    %272 = vmatprep.subr.bf16.mxu0 %v203
    %273 = vmatpush2.bf16.msra.mxu0 %v202
    %274 = vmatprep.subr.bf16.mxu0 %v201
    %275 = vmatpush2.bf16.msra.mxu0 %v200
    %276 = vmatprep.subr.bf16.mxu0 %v199
    %277 = vmatpush2.bf16.msra.mxu0 %v198
    %278 = vmatprep.mubr.bf16.mxu0 %v79
    %279 = vmatmul.mubr.bf16.gmra.mxu0 %v78
    %v280 = vpop.f32.mrf.mxu0
    %v281 = vadd.f32 0.0, %v280
    %v282 = vpop.f32.mrf.mxu0
    %v283 = vadd.f32 0.0, %v282
    %v284 = vpop.f32.mrf.mxu0
    %v285 = vpop.f32.mrf.mxu0
    %286 = vdwg.mxu0
    %287 = vmatprep.subr.bf16.mxu0 %v197
    %288 = vmatpush1.bf16.msra.mxu0 %v196
    %289 = vmatprep.subr.bf16.mxu0 %v195
    %290 = vmatpush1.bf16.msra.mxu0 %v194
    %291 = vmatprep.subr.bf16.mxu0 %v193
    %292 = vmatpush1.bf16.msra.mxu0 %v192
    %293 = vmatprep.subr.bf16.mxu0 %v191
    %294 = vmatpush1.bf16.msra.mxu0 %v190
    %295 = vmatprep.subr.bf16.mxu0 %v189
    %296 = vmatpush1.bf16.msra.mxu0 %v188
    %297 = vmatprep.subr.bf16.mxu0 %v187
    %298 = vmatpush1.bf16.msra.mxu0 %v186
    %299 = vmatprep.subr.bf16.mxu0 %v185
    %300 = vmatpush1.bf16.msra.mxu0 %v184
    %301 = vmatprep.subr.bf16.mxu0 %v183
    %302 = vmatpush1.bf16.msra.mxu0 %v182
    %303 = vmatprep.subr.bf16.mxu0 %v213
    %304 = vmatpush2.bf16.msra.mxu0 %v212
    %305 = vmatprep.subr.bf16.mxu0 %v211
    %306 = vmatpush2.bf16.msra.mxu0 %v210
    %307 = vmatprep.subr.bf16.mxu0 %v209
    %308 = vmatpush2.bf16.msra.mxu0 %v208
    %309 = vmatprep.subr.bf16.mxu0 %v207
    %310 = vmatpush2.bf16.msra.mxu0 %v206
    %311 = vmatprep.subr.bf16.mxu0 %v205
    %312 = vmatpush2.bf16.msra.mxu0 %v204
    %313 = vmatprep.subr.bf16.mxu0 %v203
    %314 = vmatpush2.bf16.msra.mxu0 %v202
    %315 = vmatprep.subr.bf16.mxu0 %v201
    %316 = vmatpush2.bf16.msra.mxu0 %v200
    %317 = vmatprep.subr.bf16.mxu0 %v199
    %318 = vmatpush2.bf16.msra.mxu0 %v198
    %319 = vmatprep.mubr.bf16.mxu0 %v73
    %320 = vmatmul.mubr.bf16.gmra.mxu0 %v72
    %v321 = vpop.f32.mrf.mxu0
    %v322 = vadd.f32 %v281, %v321
    %v323 = vpop.f32.mrf.mxu0
    %v324 = vadd.f32 %v283, %v323
    %v325 = vpop.f32.mrf.mxu0
    %v326 = vpop.f32.mrf.mxu0
    %327 = vdwg.mxu0
    %328 = vmatprep.subr.bf16.mxu0 %v197
    %329 = vmatpush1.bf16.msra.mxu0 %v196
    %330 = vmatprep.subr.bf16.mxu0 %v195
    %331 = vmatpush1.bf16.msra.mxu0 %v194
    %332 = vmatprep.subr.bf16.mxu0 %v193
    %333 = vmatpush1.bf16.msra.mxu0 %v192
    %334 = vmatprep.subr.bf16.mxu0 %v191
    %335 = vmatpush1.bf16.msra.mxu0 %v190
    %336 = vmatprep.subr.bf16.mxu0 %v189
    %337 = vmatpush1.bf16.msra.mxu0 %v188
    %338 = vmatprep.subr.bf16.mxu0 %v187
    %339 = vmatpush1.bf16.msra.mxu0 %v186
    %340 = vmatprep.subr.bf16.mxu0 %v185
    %341 = vmatpush1.bf16.msra.mxu0 %v184
    %342 = vmatprep.subr.bf16.mxu0 %v183
    %343 = vmatpush1.bf16.msra.mxu0 %v182
    %344 = vmatprep.subr.bf16.mxu0 %v213
    %345 = vmatpush2.bf16.msra.mxu0 %v212
    %346 = vmatprep.subr.bf16.mxu0 %v211
    %347 = vmatpush2.bf16.msra.mxu0 %v210
    %348 = vmatprep.subr.bf16.mxu0 %v209
    %349 = vmatpush2.bf16.msra.mxu0 %v208
    %350 = vmatprep.subr.bf16.mxu0 %v207
    %351 = vmatpush2.bf16.msra.mxu0 %v206
    %352 = vmatprep.subr.bf16.mxu0 %v205
    %353 = vmatpush2.bf16.msra.mxu0 %v204
    %354 = vmatprep.subr.bf16.mxu0 %v203
    %355 = vmatpush2.bf16.msra.mxu0 %v202
    %356 = vmatprep.subr.bf16.mxu0 %v201
    %357 = vmatpush2.bf16.msra.mxu0 %v200
    %358 = vmatprep.subr.bf16.mxu0 %v199
    %359 = vmatpush2.bf16.msra.mxu0 %v198
    %360 = vmatprep.mubr.bf16.mxu0 %v85
    %361 = vmatmul.mubr.bf16.gmra.mxu0 %v84
    %v362 = vpop.f32.mrf.mxu0
    %v363 = vadd.f32 0.0, %v362
    %v364 = vpop.f32.mrf.mxu0
    %v365 = vadd.f32 0.0, %v364
    %v366 = vpop.f32.mrf.mxu0
    %v367 = vpop.f32.mrf.mxu0
    %368 = vdwg.mxu0
    %v369 = vadd.f32 %v322, %v363
    %v370 = vadd.f32 %v324, %v365
    %371 = vst [vmem:[#allocation7] sm:$0xff] %v369
    %372 = vst [vmem:[#allocation7 + $0x8] sm:$0xff] %v370
    // Predicated region
    $region18: #{tpu_custom_call.1} parent=1 // pred_check
      _
    $region19: #{tpu_custom_call.1} parent=1 // pred_check_branch
      %374 = sbr.rel (0) target = $region21
    $region20: #{tpu_custom_call.1} parent=1 // pred_region
      %s376 = ssub.s32 256, 256
      %377 = vsyncadd [#allocation4], %s376
      %s379 = sshll.u32 [#allocation7], 4
      %s380 = int_to_ptr.vmem [resolvable:$true] %s379
      %382 = dma.vmem_to_hbm [thread:$0]  %s380, 256, %s2, [#allocation4]
    $region21: #{tpu_custom_call.1} parent=1 // pred_fallthru
      _
    // Predicated region
    $region22: #{tpu_custom_call.1} parent=1 // pred_check
      _
    $region23: #{tpu_custom_call.1} parent=1 // pred_check_branch
      %384 = sbr.rel (0) target = $region25
    $region24: #{tpu_custom_call.1} parent=1 // pred_region
      %385 = dma.done [#allocation4], 256
    $region25: #{tpu_custom_call.1} parent=1 // pred_fallthru
      _
    %386 = vsyncpa [#allocation3], 1
    %387 = vsyncpa [#allocation6], 1
    %388 = vsyncpa [#allocation4], 1

</llo_original>
